<compile_context>
chip_gen: v7x
topology: tpu7x:2x2x1
jax: 0.10.0
libtpu: 0.0.40
codegen_flags: <defaults>
</compile_context>

<pallas_src>
import jax
import jax.numpy as jnp
from jax import lax
from jax.experimental import pallas as pl
from jax.experimental.pallas import tpu as pltpu

HIDDEN = 20


def mlp_tanh_kernel(x_ref, w1_ref, b1_ref, w2_ref, b2_ref, o_ref):
    # x_ref / o_ref        : [CPB, 8, CHUNK]  (sublane+lane dense batch tiles)
    # w1_ref/b1_ref/w2_ref : [H, 8, CHUNK]    (pre-broadcast, VMEM-resident)
    # b2_ref               : [1, 1] in SMEM
    w1 = w1_ref[...]
    b1 = b1_ref[...]
    w2 = w2_ref[...]
    b2 = b2_ref[0, 0]
    cpb = x_ref.shape[0]          # static chunk count per grid block

    def chunk_body(c, carry):
        xc = x_ref[c]                              # [8, CHUNK]
        # Hidden layer (in_features == 1): broadcast multiply on the VPU,
        # tanh on the EUP over fully-dense [H, 8, CHUNK] vregs.
        h = jnp.tanh(w1 * xc[None, :, :] + b1)     # [H, 8, CHUNK]
        # Output layer (out_features == 1): weighted reduction over the H
        # leading slabs — plain VPU adds, no MXU, no cross-lane shuffles.
        yc = jnp.sum(w2 * h, axis=0) + b2          # [8, CHUNK]
        o_ref[c] = yc.astype(o_ref.dtype)
        return carry

    lax.fori_loop(0, cpb, chunk_body, 0)


def neural_network_forward(x, w1, b1, w2, b2, *, chunk_lanes=512,
                           chunks_per_block=32):
    """Forward of Linear(1, 20) -> Tanh -> Linear(20, 1).

    x:  [N, 1] float32
    w1: [1, H], b1: [1, H]   (in_features, out_features layout)
    w2: [H, 1], b2: [1, 1]
    returns [N, 1] float32
    """
    n = x.shape[0]
    hidden = w1.shape[-1]
    dtype = x.dtype

    # ---- static tiling choices -------------------------------------------
    # Lanes per compute chunk: multiple of 128, shrunk so tiny batches fit a
    # single (8, 128) vreg tile and run as one grid step.
    chunk = min(chunk_lanes, pl.cdiv(pl.cdiv(n, 8), 128) * 128)
    elems_per_chunk = 8 * chunk
    total_chunks = pl.cdiv(n, elems_per_chunk)
    cpb = min(chunks_per_block, total_chunks)      # chunks per grid block
    total_chunks = pl.cdiv(total_chunks, cpb) * cpb
    n_pad = total_chunks * elems_per_chunk
    num_blocks = total_chunks // cpb

    # ---- data layout -------------------------------------------------------
    # Flatten and (only if needed) pad the tail; when N already divides the
    # block element count this is a zero-copy metadata reshape (no extra HBM
    # pass).  TODO(synk): fully ragged tail could be masked in-kernel instead.
    x_flat = x.reshape(-1).astype(dtype)
    if n_pad != n:
        # Padded tail lanes compute tanh(b1)*w2 + b2 garbage; it is sliced off
        # below — do not drop that slice in future refactors.
        x_flat = jnp.pad(x_flat, (0, n_pad - n))
    x3 = x_flat.reshape(total_chunks, 8, chunk)

    # Weight splats hoisted into the wrapper: broadcast once to [H, 8, chunk]
    # so the kernel's inner loop is pure mul/add/tanh/reduce (no per-iteration
    # lane/sublane splats).  Pinned VMEM-resident via constant index_map.
    w1_b = jnp.broadcast_to(w1.reshape(hidden, 1, 1), (hidden, 8, chunk)).astype(dtype)
    b1_b = jnp.broadcast_to(b1.reshape(hidden, 1, 1), (hidden, 8, chunk)).astype(dtype)
    w2_b = jnp.broadcast_to(w2.reshape(hidden, 1, 1), (hidden, 8, chunk)).astype(dtype)
    b2_s = b2.reshape(1, 1).astype(dtype)

    out3 = pl.pallas_call(
        mlp_tanh_kernel,
        out_shape=jax.ShapeDtypeStruct((total_chunks, 8, chunk), dtype),
        grid=(num_blocks,),
        in_specs=[
            pl.BlockSpec((cpb, 8, chunk), lambda i: (i, 0, 0)),      # streamed x
            pl.BlockSpec((hidden, 8, chunk), lambda i: (0, 0, 0)),   # resident W1
            pl.BlockSpec((hidden, 8, chunk), lambda i: (0, 0, 0)),   # resident b1
            pl.BlockSpec((hidden, 8, chunk), lambda i: (0, 0, 0)),   # resident W2
            pl.BlockSpec(memory_space=pltpu.MemorySpace.SMEM),       # b2 scalar
        ],
        out_specs=pl.BlockSpec((cpb, 8, chunk), lambda i: (i, 0, 0)),
        compiler_params=pltpu.CompilerParams(
            dimension_semantics=("parallel",),   # shards grid across v7x's 2 TCs
        ),
        cost_estimate=pl.CostEstimate(
            flops=4 * hidden * n_pad,
            transcendentals=hidden * n_pad,
            bytes_accessed=8 * n_pad + 3 * hidden * 8 * chunk * 4,
        ),
    )(x3, w1_b, b1_b, w2_b, b2_s)

    # Strip the padded tail (see note above) and restore the [N, 1] shape.
    return out3.reshape(-1)[:n].reshape(n, 1)


def init_params(key, in_dim=1, hidden=HIDDEN, out_dim=1):
    """Deterministic init mimicking PyTorch nn.Linear (uniform +-1/sqrt(fan_in))."""
    k1, k2, k3, k4 = jax.random.split(key, 4)
    bound1 = 1.0 / jnp.sqrt(in_dim)
    bound2 = 1.0 / jnp.sqrt(hidden)
    # Stored as (in_features, out_features) — transpose of PyTorch layout.
    w1 = jax.random.uniform(k1, (in_dim, hidden), jnp.float32, -bound1, bound1)
    b1 = jax.random.uniform(k2, (1, hidden), jnp.float32, -bound1, bound1)
    w2 = jax.random.uniform(k3, (hidden, out_dim), jnp.float32, -bound2, bound2)
    b2 = jax.random.uniform(k4, (1, out_dim), jnp.float32, -bound2, bound2)
    return w1, b1, w2, b2


if __name__ == "__main__":
    key = jax.random.PRNGKey(0)
    k_params, k_x1, k_x2, k_x3 = jax.random.split(key, 4)

    w1, b1, w2, b2 = init_params(k_params)

    def ref_forward(x):
        return jnp.tanh(x @ w1 + b1) @ w2 + b2

    # Small batch -> single (8, 128) tile, single grid step.
    x_small = jax.random.normal(k_x1, (8, 1), dtype=jnp.float32)
    out_small = neural_network_forward(x_small, w1, b1, w2, b2)
    jax.block_until_ready(out_small)
    assert out_small.shape == (8, 1)
    assert jnp.allclose(out_small, ref_forward(x_small), atol=1e-5), "small-batch mismatch"

    # Non-multiple-of-128 batch exercises the padded-tail path (still grid=1).
    x_med = jax.random.normal(k_x2, (1000, 1), dtype=jnp.float32)
    out_med = neural_network_forward(x_med, w1, b1, w2, b2)
    jax.block_until_ready(out_med)
    assert out_med.shape == (1000, 1)
    assert jnp.allclose(out_med, ref_forward(x_med), atol=1e-5), "med-batch mismatch"

    # Larger ragged batch -> multi-chunk blocks, 2-step parallel grid, and the
    # in-kernel fori_loop over chunks.
    x_big = jax.random.normal(k_x3, (10000, 1), dtype=jnp.float32)
    out_big = neural_network_forward(x_big, w1, b1, w2, b2, chunks_per_block=2)
    jax.block_until_ready(out_big)
    assert out_big.shape == (10000, 1)
    assert jnp.allclose(out_big, ref_forward(x_big), atol=1e-5), "big-batch mismatch"

    print("KERNEL_OK")
</pallas_src>

<mosaic_0001>
module attributes {stable_mosaic.version = 11 : i64} {
  func.func @mlp_tanh_kernel(%arg0: i32, %arg1: memref<1x8x128xf32, #tpu.memory_space<vmem>>, %arg2: memref<20x8x128xf32, #tpu.memory_space<vmem>>, %arg3: memref<20x8x128xf32, #tpu.memory_space<vmem>>, %arg4: memref<20x8x128xf32, #tpu.memory_space<vmem>>, %arg5: memref<1x1xf32, #tpu.memory_space<smem>>, %arg6: memref<1x8x128xf32, #tpu.memory_space<vmem>>) attributes {dimension_semantics = [#tpu.dimension_semantics<parallel>], iteration_bounds = array<i64: 1>, scalar_prefetch = 0 : i64, scratch_operands = 0 : i64, tpu.core_type = #tpu.core_type<tc>, window_params = [{transform_indices = @transform_0, window_bounds = array<i64: 1, 8, 128>}, {pipeline_mode = #tpu.pipeline_mode<synchronous>, transform_indices = @transform_1, window_bounds = array<i64: 20, 8, 128>}, {pipeline_mode = #tpu.pipeline_mode<synchronous>, transform_indices = @transform_2, window_bounds = array<i64: 20, 8, 128>}, {pipeline_mode = #tpu.pipeline_mode<synchronous>, transform_indices = @transform_3, window_bounds = array<i64: 20, 8, 128>}, {transform_indices = @transform_4, window_bounds = array<i64: 1, 1>}, {transform_indices = @transform_5, window_bounds = array<i64: 1, 8, 128>}]} {
    %c0 = arith.constant 0 : index
    %c0_0 = arith.constant 0 : index
    %c0_1 = arith.constant 0 : index
    %0 = vector.load %arg2[%c0, %c0_0, %c0_1] : memref<20x8x128xf32, #tpu.memory_space<vmem>>, vector<20x8x128xf32>
    %c0_2 = arith.constant 0 : index
    %c0_3 = arith.constant 0 : index
    %c0_4 = arith.constant 0 : index
    %1 = vector.load %arg3[%c0_2, %c0_3, %c0_4] : memref<20x8x128xf32, #tpu.memory_space<vmem>>, vector<20x8x128xf32>
    %c0_5 = arith.constant 0 : index
    %c0_6 = arith.constant 0 : index
    %c0_7 = arith.constant 0 : index
    %2 = vector.load %arg4[%c0_5, %c0_6, %c0_7] : memref<20x8x128xf32, #tpu.memory_space<vmem>>, vector<20x8x128xf32>
    %c0_8 = arith.constant 0 : index
    %c0_9 = arith.constant 0 : index
    %3 = memref.load %arg5[%c0_8, %c0_9] : memref<1x1xf32, #tpu.memory_space<smem>>
    %c0_i32 = arith.constant 0 : i32
    %4 = arith.index_cast %c0_i32 : i32 to index
    %c0_10 = arith.constant 0 : index
    %c0_11 = arith.constant 0 : index
    %5 = vector.load %arg1[%4, %c0_10, %c0_11] : memref<1x8x128xf32, #tpu.memory_space<vmem>>, vector<1x8x128xf32>
    %6 = vector.shape_cast %5 : vector<1x8x128xf32> to vector<8x128xf32>
    %7 = vector.shape_cast %6 : vector<8x128xf32> to vector<1x8x128xf32>
    %8 = vector.broadcast %7 : vector<1x8x128xf32> to vector<20x8x128xf32>
    %9 = arith.mulf %0, %8 : vector<20x8x128xf32>
    %10 = arith.addf %9, %1 : vector<20x8x128xf32>
    %11 = math.tanh %10 : vector<20x8x128xf32>
    %12 = arith.mulf %2, %11 : vector<20x8x128xf32>
    %cst = arith.constant dense<0.000000e+00> : vector<8x128xf32>
    %13 = vector.multi_reduction <add>, %12, %cst [0] : vector<20x8x128xf32> to vector<8x128xf32>
    %14 = vector.broadcast %3 : f32 to vector<8x128xf32>
    %15 = arith.addf %13, %14 : vector<8x128xf32>
    %16 = arith.index_cast %c0_i32 : i32 to index
    %c0_12 = arith.constant 0 : index
    %c0_13 = arith.constant 0 : index
    %17 = vector.load %arg6[%16, %c0_12, %c0_13] : memref<1x8x128xf32, #tpu.memory_space<vmem>>, vector<1x8x128xf32>
    %18 = vector.shape_cast %17 : vector<1x8x128xf32> to vector<8x128xf32>
    %19 = vector.shape_cast %15 : vector<8x128xf32> to vector<1x8x128xf32>
    tpu.vector_store %arg6[%16, %c0_12, %c0_13], %19 {strides = array<i32>} : memref<1x8x128xf32, #tpu.memory_space<vmem>>, vector<1x8x128xf32>,
    %c1_i32 = arith.constant 1 : i32
    return
  }
  func.func @transform_0(%arg0: i32) -> (i32, i32, i32) {
    %c0_i32 = arith.constant 0 : i32
    %c0_i32_0 = arith.constant 0 : i32
    %c0_i32_1 = arith.constant 0 : i32
    return %arg0, %c0_i32, %c0_i32_0 : i32, i32, i32
  }
  func.func @transform_1(%arg0: i32) -> (i32, i32, i32) {
    %c0_i32 = arith.constant 0 : i32
    %c0_i32_0 = arith.constant 0 : i32
    %c0_i32_1 = arith.constant 0 : i32
    %c0_i32_2 = arith.constant 0 : i32
    return %c0_i32, %c0_i32_0, %c0_i32_1 : i32, i32, i32
  }
  func.func @transform_2(%arg0: i32) -> (i32, i32, i32) {
    %c0_i32 = arith.constant 0 : i32
    %c0_i32_0 = arith.constant 0 : i32
    %c0_i32_1 = arith.constant 0 : i32
    %c0_i32_2 = arith.constant 0 : i32
    return %c0_i32, %c0_i32_0, %c0_i32_1 : i32, i32, i32
  }
  func.func @transform_3(%arg0: i32) -> (i32, i32, i32) {
    %c0_i32 = arith.constant 0 : i32
    %c0_i32_0 = arith.constant 0 : i32
    %c0_i32_1 = arith.constant 0 : i32
    %c0_i32_2 = arith.constant 0 : i32
    return %c0_i32, %c0_i32_0, %c0_i32_1 : i32, i32, i32
  }
  func.func @transform_4(%arg0: i32) -> (i32, i32) {
    %c0_i32 = arith.constant 0 : i32
    %c0_i32_0 = arith.constant 0 : i32
    %c0_i32_1 = arith.constant 0 : i32
    return %c0_i32, %c0_i32_0 : i32, i32
  }
  func.func @transform_5(%arg0: i32) -> (i32, i32, i32) {
    %c0_i32 = arith.constant 0 : i32
    %c0_i32_0 = arith.constant 0 : i32
    %c0_i32_1 = arith.constant 0 : i32
    return %arg0, %c0_i32, %c0_i32_0 : i32, i32, i32
  }
}

</mosaic_0001>

<llo_original>
// kernel: tpu_custom_call.1
$region0: #{tpu_custom_call.1}
  #allocation0 [shape = 'u32[]', space=smem, size = 0x4, offset = 0x4, fixed_abs, tag = 'smem constant byte address 0x4 - core index']
  #allocation1 [shape = 'u32[144,128]{1,0:T(1,128)}', space=vmem, size = 0x12000, scoped, tag = 'internal scratch']
  #allocation2 [shape = 'f32[1,1]{1,0:T(1,128)S(6)}', space=smem, size = 0x200, scoped, tag = 'scoped memory for tpu_custom_call.1']
  %s0 = inlined_call_operand.hbm [shape: f32[1,8,128], index: 0, kind: input, shape index: {}]
  %s1 = inlined_call_operand.hbm [shape: f32[20,8,128], index: 1, kind: input, shape index: {}]
  %s2 = inlined_call_operand.hbm [shape: f32[20,8,128], index: 2, kind: input, shape index: {}]
  %s3 = inlined_call_operand.hbm [shape: f32[20,8,128], index: 3, kind: input, shape index: {}]
  %s4 = inlined_call_operand.<no memory space> [shape: f32[1,1], index: 4, kind: input, shape index: {}]
  %s5 = inlined_call_operand.hbm [shape: f32[1,8,128], index: 5, kind: output, shape index: {}]
  %s6 = sld [smem:[#allocation0]]
  $region46: #{tpu_custom_call.1} parent=0
    _
  %s8 = ssub.s32 1, %s6
  %s9 = scalar_select 0, %s8, %s6
  %10 = sst [smem:[#allocation2]] %s4
  $region1: #{tpu_custom_call.1} parent=0
    #allocation3 [shape = 'u8[4096]{0}', space=vmem, size = 0x1000, scoped, tag = 'input window, operand 0, single buffered']
    #allocation4 [shape = 's32[1]{0}', space=sflag, size = 0x4, scoped, tag = 'scoped memory for tpu_custom_call.1']
    #allocation5 [shape = 's32[1]{0}', space=sflag, size = 0x4, scoped, tag = 'scoped memory for tpu_custom_call.1']
    #allocation6 [shape = 'u8[81920]{0}', space=vmem, size = 0x14000, scoped, tag = 'input window, operand 1, single buffered']
    #allocation7 [shape = 's32[1]{0}', space=sflag, size = 0x4, scoped, tag = 'scoped memory for tpu_custom_call.1']
    #allocation8 [shape = 'u8[81920]{0}', space=vmem, size = 0x14000, scoped, tag = 'input window, operand 2, single buffered']
    #allocation9 [shape = 'u8[81920]{0}', space=vmem, size = 0x14000, scoped, tag = 'input window, operand 3, single buffered']
    #allocation10 [shape = 's32[1]{0}', space=sflag, size = 0x4, scoped, tag = 'scoped memory for tpu_custom_call.1']
    #allocation11 [shape = 'u8[4096]{0}', space=vmem, size = 0x1000, scoped, tag = 'output window, operand 0, single buffered']
    %11 = vsyncpa [#allocation4], 0
    %12 = vsyncpa [#allocation7], 0
    %13 = vsyncpa [#allocation10], 0
    %14 = vsyncpa [#allocation5], 0
    // Predicated region
    $region2: #{tpu_custom_call.1} parent=1 // pred_check
      _
    $region3: #{tpu_custom_call.1} parent=1 // pred_check_branch
      %16 = sbr.rel (0) target = $region5
    $region4: #{tpu_custom_call.1} parent=1 // pred_region
      %s18 = ssub.s32 128, 128
      %19 = vsyncadd [#allocation4], %s18
      %s21 = sshll.u32 [#allocation3], 4
      %s22 = int_to_ptr.vmem [resolvable:$true] %s21
      %24 = dma.hbm_to_vmem [thread:$0]  %s0, 128, %s22, [#allocation4]
    $region5: #{tpu_custom_call.1} parent=1 // pred_fallthru
      _
    // Predicated region
    $region6: #{tpu_custom_call.1} parent=1 // pred_check
      _
    $region7: #{tpu_custom_call.1} parent=1 // pred_check_branch
      %26 = sbr.rel (0) target = $region9
    $region8: #{tpu_custom_call.1} parent=1 // pred_region
      %s28 = ssub.s32 2560, 2560
      %29 = vsyncadd [#allocation7], %s28
      %s30 = sshll.u32 [#allocation6], 4
      %s31 = int_to_ptr.vmem [resolvable:$true] %s30
      %36 = dma.hbm_to_vmem [thread:$0]  %s1, 2560, %s31, [#allocation7], 128, 128, 8
    $region9: #{tpu_custom_call.1} parent=1 // pred_fallthru
      _
    // Predicated region
    $region10: #{tpu_custom_call.1} parent=1 // pred_check
      _
    $region11: #{tpu_custom_call.1} parent=1 // pred_check_branch
      %38 = sbr.rel (0) target = $region13
    $region12: #{tpu_custom_call.1} parent=1 // pred_region
      %s40 = ssub.s32 2560, 2560
      %41 = vsyncadd [#allocation7], %s40
      %s42 = sshll.u32 [#allocation8], 4
      %s43 = int_to_ptr.vmem [resolvable:$true] %s42
      %48 = dma.hbm_to_vmem [thread:$0]  %s2, 2560, %s43, [#allocation7], 128, 128, 8
    $region13: #{tpu_custom_call.1} parent=1 // pred_fallthru
      _
    // Predicated region
    $region14: #{tpu_custom_call.1} parent=1 // pred_check
      _
    $region15: #{tpu_custom_call.1} parent=1 // pred_check_branch
      %50 = sbr.rel (0) target = $region17
    $region16: #{tpu_custom_call.1} parent=1 // pred_region
      %s52 = ssub.s32 2560, 2560
      %53 = vsyncadd [#allocation10], %s52
      %s54 = sshll.u32 [#allocation9], 4
      %s55 = int_to_ptr.vmem [resolvable:$true] %s54
      %60 = dma.hbm_to_vmem [thread:$0]  %s3, 2560, %s55, [#allocation10], 128, 128, 8
    $region17: #{tpu_custom_call.1} parent=1 // pred_fallthru
      _
    // Predicated region
    $region18: #{tpu_custom_call.1} parent=1 // pred_check
      _
    $region19: #{tpu_custom_call.1} parent=1 // pred_check_branch
      %62 = sbr.rel (0) target = $region21
    $region20: #{tpu_custom_call.1} parent=1 // pred_region
      _
    $region21: #{tpu_custom_call.1} parent=1 // pred_fallthru
      _
    // Predicated region
    $region22: #{tpu_custom_call.1} parent=1 // pred_check
      _
    $region23: #{tpu_custom_call.1} parent=1 // pred_check_branch
      %64 = sbr.rel (0) target = $region25
    $region24: #{tpu_custom_call.1} parent=1 // pred_region
      %65 = dma.done [#allocation4], 128
    $region25: #{tpu_custom_call.1} parent=1 // pred_fallthru
      _
    // Predicated region
    $region26: #{tpu_custom_call.1} parent=1 // pred_check
      _
    $region27: #{tpu_custom_call.1} parent=1 // pred_check_branch
      %67 = sbr.rel (0) target = $region29
    $region28: #{tpu_custom_call.1} parent=1 // pred_region
      %68 = dma.done [#allocation7], 2560
    $region29: #{tpu_custom_call.1} parent=1 // pred_fallthru
      _
    // Predicated region
    $region30: #{tpu_custom_call.1} parent=1 // pred_check
      _
    $region31: #{tpu_custom_call.1} parent=1 // pred_check_branch
      %70 = sbr.rel (0) target = $region33
    $region32: #{tpu_custom_call.1} parent=1 // pred_region
      %71 = dma.done [#allocation7], 2560
    $region33: #{tpu_custom_call.1} parent=1 // pred_fallthru
      _
    // Predicated region
    $region34: #{tpu_custom_call.1} parent=1 // pred_check
      _
    $region35: #{tpu_custom_call.1} parent=1 // pred_check_branch
      %73 = sbr.rel (0) target = $region37
    $region36: #{tpu_custom_call.1} parent=1 // pred_region
      %74 = dma.done [#allocation10], 2560
    $region37: #{tpu_custom_call.1} parent=1 // pred_fallthru
      _
    %v75 = vld [vmem:[#allocation6] sm:$0xff]
    %v76 = vld [vmem:[#allocation6 + $0x8] sm:$0xff]
    %v77 = vld [vmem:[#allocation6 + $0x10] sm:$0xff]
    %v78 = vld [vmem:[#allocation6 + $0x18] sm:$0xff]
    %v79 = vld [vmem:[#allocation6 + $0x20] sm:$0xff]
    %v80 = vld [vmem:[#allocation6 + $0x28] sm:$0xff]
    %v81 = vld [vmem:[#allocation6 + $0x30] sm:$0xff]
    %v82 = vld [vmem:[#allocation6 + $0x38] sm:$0xff]
    %v83 = vld [vmem:[#allocation6 + $0x40] sm:$0xff]
    %v84 = vld [vmem:[#allocation6 + $0x48] sm:$0xff]
    %v85 = vld [vmem:[#allocation6 + $0x50] sm:$0xff]
    %v86 = vld [vmem:[#allocation6 + $0x58] sm:$0xff]
    %v87 = vld [vmem:[#allocation6 + $0x60] sm:$0xff]
    %v88 = vld [vmem:[#allocation6 + $0x68] sm:$0xff]
    %v89 = vld [vmem:[#allocation6 + $0x70] sm:$0xff]
    %v90 = vld [vmem:[#allocation6 + $0x78] sm:$0xff]
    %v91 = vld [vmem:[#allocation6 + $0x80] sm:$0xff]
    %v92 = vld [vmem:[#allocation6 + $0x88] sm:$0xff]
    %v93 = vld [vmem:[#allocation6 + $0x90] sm:$0xff]
    %v94 = vld [vmem:[#allocation6 + $0x98] sm:$0xff]
    %v95 = vld [vmem:[#allocation8] sm:$0xff]
    %v96 = vld [vmem:[#allocation8 + $0x8] sm:$0xff]
    %v97 = vld [vmem:[#allocation8 + $0x10] sm:$0xff]
    %v98 = vld [vmem:[#allocation8 + $0x18] sm:$0xff]
    %v99 = vld [vmem:[#allocation8 + $0x20] sm:$0xff]
    %v100 = vld [vmem:[#allocation8 + $0x28] sm:$0xff]
    %v101 = vld [vmem:[#allocation8 + $0x30] sm:$0xff]
    %v102 = vld [vmem:[#allocation8 + $0x38] sm:$0xff]
    %v103 = vld [vmem:[#allocation8 + $0x40] sm:$0xff]
    %v104 = vld [vmem:[#allocation8 + $0x48] sm:$0xff]
    %v105 = vld [vmem:[#allocation8 + $0x50] sm:$0xff]
    %v106 = vld [vmem:[#allocation8 + $0x58] sm:$0xff]
    %v107 = vld [vmem:[#allocation8 + $0x60] sm:$0xff]
    %v108 = vld [vmem:[#allocation8 + $0x68] sm:$0xff]
    %v109 = vld [vmem:[#allocation8 + $0x70] sm:$0xff]
    %v110 = vld [vmem:[#allocation8 + $0x78] sm:$0xff]
    %v111 = vld [vmem:[#allocation8 + $0x80] sm:$0xff]
    %v112 = vld [vmem:[#allocation8 + $0x88] sm:$0xff]
    %v113 = vld [vmem:[#allocation8 + $0x90] sm:$0xff]
    %v114 = vld [vmem:[#allocation8 + $0x98] sm:$0xff]
    %v115 = vld [vmem:[#allocation9] sm:$0xff]
    %v116 = vld [vmem:[#allocation9 + $0x8] sm:$0xff]
    %v117 = vld [vmem:[#allocation9 + $0x10] sm:$0xff]
    %v118 = vld [vmem:[#allocation9 + $0x18] sm:$0xff]
    %v119 = vld [vmem:[#allocation9 + $0x20] sm:$0xff]
    %v120 = vld [vmem:[#allocation9 + $0x28] sm:$0xff]
    %v121 = vld [vmem:[#allocation9 + $0x30] sm:$0xff]
    %v122 = vld [vmem:[#allocation9 + $0x38] sm:$0xff]
    %v123 = vld [vmem:[#allocation9 + $0x40] sm:$0xff]
    %v124 = vld [vmem:[#allocation9 + $0x48] sm:$0xff]
    %v125 = vld [vmem:[#allocation9 + $0x50] sm:$0xff]
    %v126 = vld [vmem:[#allocation9 + $0x58] sm:$0xff]
    %v127 = vld [vmem:[#allocation9 + $0x60] sm:$0xff]
    %v128 = vld [vmem:[#allocation9 + $0x68] sm:$0xff]
    %v129 = vld [vmem:[#allocation9 + $0x70] sm:$0xff]
    %v130 = vld [vmem:[#allocation9 + $0x78] sm:$0xff]
    %v131 = vld [vmem:[#allocation9 + $0x80] sm:$0xff]
    %v132 = vld [vmem:[#allocation9 + $0x88] sm:$0xff]
    %v133 = vld [vmem:[#allocation9 + $0x90] sm:$0xff]
    %v134 = vld [vmem:[#allocation9 + $0x98] sm:$0xff]
    %s135 = sld [smem:[#allocation2]]
    %v136 = vld [vmem:[#allocation3] sm:$0xff]
    %v137 = vmul.f32 %v75, %v136
    %v138 = vmul.f32 %v76, %v136
    %v139 = vmul.f32 %v77, %v136
    %v140 = vmul.f32 %v78, %v136
    %v141 = vmul.f32 %v79, %v136
    %v142 = vmul.f32 %v80, %v136
    %v143 = vmul.f32 %v81, %v136
    %v144 = vmul.f32 %v82, %v136
    %v145 = vmul.f32 %v83, %v136
    %v146 = vmul.f32 %v84, %v136
    %v147 = vmul.f32 %v85, %v136
    %v148 = vmul.f32 %v86, %v136
    %v149 = vmul.f32 %v87, %v136
    %v150 = vmul.f32 %v88, %v136
    %v151 = vmul.f32 %v89, %v136
    %v152 = vmul.f32 %v90, %v136
    %v153 = vmul.f32 %v91, %v136
    %v154 = vmul.f32 %v92, %v136
    %v155 = vmul.f32 %v93, %v136
    %v156 = vmul.f32 %v94, %v136
    %v157 = vadd.f32 %v137, %v95
    %v158 = vadd.f32 %v138, %v96
    %v159 = vadd.f32 %v139, %v97
    %v160 = vadd.f32 %v140, %v98
    %v161 = vadd.f32 %v141, %v99
    %v162 = vadd.f32 %v142, %v100
    %v163 = vadd.f32 %v143, %v101
    %v164 = vadd.f32 %v144, %v102
    %v165 = vadd.f32 %v145, %v103
    %v166 = vadd.f32 %v146, %v104
    %v167 = vadd.f32 %v147, %v105
    %v168 = vadd.f32 %v148, %v106
    %v169 = vadd.f32 %v149, %v107
    %v170 = vadd.f32 %v150, %v108
    %v171 = vadd.f32 %v151, %v109
    %v172 = vadd.f32 %v152, %v110
    %v173 = vadd.f32 %v153, %v111
    %v174 = vadd.f32 %v154, %v112
    %v175 = vadd.f32 %v155, %v113
    %v176 = vadd.f32 %v156, %v114
    %v177 = vtanh.pop %v157
    %v178 = vtanh.pop %v158
    %v179 = vtanh.pop %v159
    %v180 = vtanh.pop %v160
    %v181 = vtanh.pop %v161
    %v182 = vtanh.pop %v162
    %v183 = vtanh.pop %v163
    %v184 = vtanh.pop %v164
    %v185 = vtanh.pop %v165
    %v186 = vtanh.pop %v166
    %v187 = vtanh.pop %v167
    %v188 = vtanh.pop %v168
    %v189 = vtanh.pop %v169
    %v190 = vtanh.pop %v170
    %v191 = vtanh.pop %v171
    %v192 = vtanh.pop %v172
    %v193 = vtanh.pop %v173
    %v194 = vtanh.pop %v174
    %v195 = vtanh.pop %v175
    %v196 = vtanh.pop %v176
    %v197 = vmul.f32 %v115, %v177
    %v198 = vmul.f32 %v116, %v178
    %v199 = vmul.f32 %v117, %v179
    %v200 = vmul.f32 %v118, %v180
    %v201 = vmul.f32 %v119, %v181
    %v202 = vmul.f32 %v120, %v182
    %v203 = vmul.f32 %v121, %v183
    %v204 = vmul.f32 %v122, %v184
    %v205 = vmul.f32 %v123, %v185
    %v206 = vmul.f32 %v124, %v186
    %v207 = vmul.f32 %v125, %v187
    %v208 = vmul.f32 %v126, %v188
    %v209 = vmul.f32 %v127, %v189
    %v210 = vmul.f32 %v128, %v190
    %v211 = vmul.f32 %v129, %v191
    %v212 = vmul.f32 %v130, %v192
    %v213 = vmul.f32 %v131, %v193
    %v214 = vmul.f32 %v132, %v194
    %v215 = vmul.f32 %v133, %v195
    %v216 = vmul.f32 %v134, %v196
    %v217 = vadd.f32 %v197, %v198
    %v218 = vadd.f32 %v217, %v199
    %v219 = vadd.f32 %v218, %v200
    %v220 = vadd.f32 %v219, %v201
    %v221 = vadd.f32 %v220, %v202
    %v222 = vadd.f32 %v221, %v203
    %v223 = vadd.f32 %v222, %v204
    %v224 = vadd.f32 %v223, %v205
    %v225 = vadd.f32 %v224, %v206
    %v226 = vadd.f32 %v225, %v207
    %v227 = vadd.f32 %v226, %v208
    %v228 = vadd.f32 %v227, %v209
    %v229 = vadd.f32 %v228, %v210
    %v230 = vadd.f32 %v229, %v211
    %v231 = vadd.f32 %v230, %v212
    %v232 = vadd.f32 %v231, %v213
    %v233 = vadd.f32 %v232, %v214
    %v234 = vadd.f32 %v233, %v215
    %v235 = vadd.f32 %v234, %v216
    %v236 = vstv %s135
    %v237 = vadd.f32 %v235, %v236
    %238 = vst [vmem:[#allocation11] sm:$0xff] %v237
    // Predicated region
    $region38: #{tpu_custom_call.1} parent=1 // pred_check
      _
    $region39: #{tpu_custom_call.1} parent=1 // pred_check_branch
      %240 = sbr.rel (0) target = $region41
    $region40: #{tpu_custom_call.1} parent=1 // pred_region
      %s242 = ssub.s32 128, 128
      %243 = vsyncadd [#allocation5], %s242
      %s245 = sshll.u32 [#allocation11], 4
      %s246 = int_to_ptr.vmem [resolvable:$true] %s245
      %248 = dma.vmem_to_hbm [thread:$0]  %s246, 128, %s5, [#allocation5]
    $region41: #{tpu_custom_call.1} parent=1 // pred_fallthru
      _
    // Predicated region
    $region42: #{tpu_custom_call.1} parent=1 // pred_check
      _
    $region43: #{tpu_custom_call.1} parent=1 // pred_check_branch
      %250 = sbr.rel (0) target = $region45
    $region44: #{tpu_custom_call.1} parent=1 // pred_region
      %251 = dma.done [#allocation5], 128
    $region45: #{tpu_custom_call.1} parent=1 // pred_fallthru
      _
    %252 = vsyncpa [#allocation4], 1
    %253 = vsyncpa [#allocation7], 1
    %254 = vsyncpa [#allocation10], 1
    %255 = vsyncpa [#allocation5], 1

</llo_original>
